<compile_context>
chip_gen: v5e
topology: v5e:2x2
jax: 0.10.0
libtpu: 0.0.40
codegen_flags: <defaults>
</compile_context>

<pallas_src>
import jax
import jax.numpy as jnp
from jax.experimental import pallas as pl
from jax.experimental.pallas import tpu as pltpu

LANES = 128
MAX_BLOCK_ROWS = 2048            # 2048 x 128 f32 = 1 MiB per streamed block
_STRIP_ROWS = 256                # strip = 256x128 f32 -> bounded vreg pressure
_RESIDENT_MAX_ELEMS = 64 * 1024  # per-tensor element cap for resident path
_RESIDENT_TOTAL_BYTES = 8 << 20  # total padded VMEM footprint cap
_RESIDENT_VMEM_LIMIT = 24 << 20
_RESIDENT_DMA_AHEAD = 4          # whole-tensor DMAs kept in flight
_HBM_BYTES_PER_US = 0.8e6        # conservative HBM BW for the block-size model
_STEP_US = 0.35                  # per-grid-step overhead


def _round_up(x, m):
    return ((x + m - 1) // m) * m


def _sublane_multiple(dtype):
    # Min second-minor tile: f32 -> 8, bf16 -> 16, int8/fp8 -> 32.
    return max(8, 32 // jnp.dtype(dtype).itemsize)


def _vmem_footprint_bytes(t):
    """Tile-padded VMEM bytes a whole-tensor scratch buffer would occupy."""
    shape = tuple(int(d) for d in t.shape)
    if len(shape) < 2:
        shape = (1,) * (2 - len(shape)) + shape
    lead = 1
    for d in shape[:-2]:
        lead *= d
    sub = _round_up(shape[-2], _sublane_multiple(t.dtype))
    lane = _round_up(shape[-1], LANES)
    return lead * sub * lane * jnp.dtype(t.dtype).itemsize


# --------------------------------------------------------------------------
# Resident path: tensors passed as-is (no wrapper copies), whole-tensor DMAs.
# --------------------------------------------------------------------------
def _resident_sums(tensors):
    """Per-tensor sum(x*(x-1)) with zero wrapper-side data movement."""
    tensors = [t.reshape((1, -1)) if t.ndim < 2 else t for t in tensors]
    T = len(tensors)
    ahead = min(T, _RESIDENT_DMA_AHEAD)

    def kernel(*refs):
        hbm = refs[:T]
        out_ref = refs[T]
        bufs = refs[T + 1:T + 1 + T]
        sem = refs[T + 1 + T]
        copies = [pltpu.make_async_copy(hbm[t], bufs[t], sem.at[t])
                  for t in range(T)]
        for t in range(ahead):          # prime a few whole-tensor DMAs
            copies[t].start()
        for t in range(T):
            copies[t].wait()
            if t + ahead < T:           # keep the DMA queue fed
                copies[t + ahead].start()
            x = bufs[t][...].astype(jnp.float32)   # cast in-kernel (free-ish)
            out_ref[t] = jnp.sum(x * (x - 1.0))

    return pl.pallas_call(
        kernel,
        out_shape=jax.ShapeDtypeStruct((T,), jnp.float32),
        in_specs=[pl.BlockSpec(memory_space=pl.ANY) for _ in range(T)],
        out_specs=pl.BlockSpec(memory_space=pltpu.SMEM),
        scratch_shapes=[pltpu.VMEM(t.shape, t.dtype) for t in tensors]
                       + [pltpu.SemaphoreType.DMA((T,))],
        compiler_params=pltpu.CompilerParams(
            vmem_limit_bytes=_RESIDENT_VMEM_LIMIT),
    )(*tensors)


# --------------------------------------------------------------------------
# Streaming path: per-dtype native-dtype slab, parallel grid, block partials.
# --------------------------------------------------------------------------
def _choose_block_rows(sizes, dtype, mult, max_rows):
    """Pick block_rows minimizing (padded HBM bytes / BW + steps * overhead)."""
    itemsize = jnp.dtype(dtype).itemsize
    best, best_cost = mult, None
    br = mult
    while br <= max_rows:
        chunk = br * LANES
        blocks = sum(-(-n // chunk) for n in sizes)
        cost = (blocks * chunk * itemsize) / _HBM_BYTES_PER_US + blocks * _STEP_US
        if best_cost is None or cost <= best_cost:
            best, best_cost = br, cost
        br *= 2
    return best


def _make_stream_kernel(block_rows, strip_rows):
    n_strips = block_rows // strip_rows

    def kernel(x_ref, out_ref):
        acc = jnp.zeros((8, LANES), jnp.float32)
        for s in range(n_strips):              # static strips: bounded liveness
            x = x_ref[pl.ds(s * strip_rows, strip_rows), :].astype(jnp.float32)
            term = x * (x - 1.0)               # padded zeros contribute 0
            acc = acc + jnp.sum(term.reshape(strip_rows // 8, 8, LANES), axis=0)
        out_ref[0] = acc                       # lane-dense per-block partial

    return kernel


def _stream_sums(tensors, dtype, max_block_rows):
    """Per-tensor sum(x*(x-1)) for one dtype group via a streamed slab."""
    sizes = [int(t.size) for t in tensors]
    mult = _sublane_multiple(dtype)
    block_rows = _choose_block_rows(sizes, dtype, mult, max_block_rows)
    chunk = block_rows * LANES
    strip_rows = min(_STRIP_ROWS, block_rows)

    # TODO(synk): this pad+concat slab still re-materializes the data once;
    # only taken for tensors too large for the resident (zero-copy) path.
    flats, seg_ids = [], []
    for idx, (t, n) in enumerate(zip(tensors, sizes)):
        padded = pl.cdiv(n, chunk) * chunk
        flats.append(jnp.pad(jnp.ravel(t), (0, padded - n)))
        seg_ids += [idx] * (padded // chunk)
    slab = jnp.concatenate(flats).reshape(-1, LANES)
    num_blocks = len(seg_ids)

    partials = pl.pallas_call(
        _make_stream_kernel(block_rows, strip_rows),
        out_shape=jax.ShapeDtypeStruct((num_blocks, 8, LANES), jnp.float32),
        grid=(num_blocks,),
        in_specs=[pl.BlockSpec((block_rows, LANES), lambda i: (i, 0))],
        out_specs=pl.BlockSpec((1, 8, LANES), lambda i: (i, 0, 0)),
        compiler_params=pltpu.CompilerParams(
            dimension_semantics=("parallel",)),   # no carried state -> dual-TC OK
    )(slab)

    block_sums = jnp.sum(partials, axis=(1, 2))   # tiny wrapper-side reduce
    return jax.ops.segment_sum(block_sums,
                               jnp.array(seg_ids, jnp.int32),
                               num_segments=len(tensors))


# --------------------------------------------------------------------------
# DiscLoss forward
# --------------------------------------------------------------------------
def disc_loss(msd_gt, mpd_gt, msd_pred, mpd_pred, *,
              force_stream=False, max_block_rows=MAX_BLOCK_ROWS):
    """Matches DiscLoss.forward: only mpd_pred[-1] and msd_gt[-1] are used."""
    tensors = [jnp.asarray(t) for t in list(mpd_pred[-1]) + list(msd_gt[-1])]
    T = len(tensors)
    if T == 0:
        return {"d_loss": jnp.float32(0.0)}

    sizes = [int(t.size) for t in tensors]
    sums = [None] * T

    # Route each tensor: small/medium -> resident (zero-copy), rest -> stream.
    resident_idx, stream_idx = [], []
    if force_stream:
        stream_idx = list(range(T))
    else:
        used = 0
        for i, t in enumerate(tensors):
            fb = _vmem_footprint_bytes(t)
            if sizes[i] <= _RESIDENT_MAX_ELEMS and used + fb <= _RESIDENT_TOTAL_BYTES:
                resident_idx.append(i)
                used += fb
            else:
                stream_idx.append(i)

    if resident_idx:
        rs = _resident_sums([tensors[i] for i in resident_idx])
        for j, i in enumerate(resident_idx):
            sums[i] = rs[j]

    if stream_idx:
        by_dtype = {}
        for i in stream_idx:
            by_dtype.setdefault(jnp.dtype(tensors[i].dtype).name, []).append(i)
        for _, idxs in sorted(by_dtype.items()):
            gs = _stream_sums([tensors[i] for i in idxs],
                              tensors[idxs[0]].dtype, max_block_rows)
            for j, i in enumerate(idxs):
                sums[i] = gs[j]

    s = jnp.stack([sums[i] for i in range(T)])
    n = jnp.array(sizes, jnp.float32)
    # mean((x-1)^2) + mean(x^2) = 2*mean(x*(x-1)) + 1, summed over tensors.
    d_loss = jnp.sum(2.0 * s / n + 1.0)
    return {"d_loss": d_loss}


def _ref_term(x):
    x = jnp.asarray(x, jnp.float32)
    return jnp.mean((x - 1.0) ** 2) + jnp.mean(x ** 2)


if __name__ == "__main__":
    key = jax.random.PRNGKey(0)
    ks = jax.random.split(key, 12)

    # DiscLoss-consistent synthetic inputs (lists-of-lists of tensors);
    # only the LAST inner list of mpd_pred and msd_gt is consumed.
    mpd_pred = [
        [jax.random.normal(ks[0], (2, 1, 40))],                  # unused inner list
        [jax.random.normal(ks[1], (2, 1, 60)),
         jax.random.normal(ks[2], (2, 4, 16, 16)),               # 2048 elems
         jax.random.normal(ks[3], (2, 4, 128, 128)),             # large -> streaming
         jax.random.normal(ks[4], (2, 1, 33))],
    ]
    msd_gt = [
        [jax.random.normal(ks[5], (2, 1, 40))],                  # unused inner list
        [jax.random.normal(ks[6], (2, 1, 100)),
         jax.random.normal(ks[7], (2, 1, 80)).astype(jnp.bfloat16),  # mixed dtype
         jax.random.normal(ks[8], (2, 1, 50))],
    ]
    # Unused by the reference forward, constructed only for signature fidelity.
    mpd_gt = [[jax.random.normal(ks[9], (2, 1, 60))]]
    msd_pred = [[jax.random.normal(ks[10], (2, 1, 100))]]

    ref = (sum(_ref_term(t) for t in mpd_pred[-1])
           + sum(_ref_term(t) for t in msd_gt[-1]))

    # Default routing: small tensors -> resident kernel, big one -> streaming.
    out = disc_loss(msd_gt, mpd_gt, msd_pred, mpd_pred)
    d_loss = jax.block_until_ready(out["d_loss"])
    assert jnp.allclose(d_loss, ref, rtol=2e-5, atol=2e-5), (d_loss, ref)

    # Force everything through the streaming path (multi-block, per-dtype slabs).
    out_s = disc_loss(msd_gt, mpd_gt, msd_pred, mpd_pred,
                      force_stream=True, max_block_rows=64)
    d_loss_s = jax.block_until_ready(out_s["d_loss"])
    assert jnp.allclose(d_loss_s, ref, rtol=2e-5, atol=2e-5), (d_loss_s, ref)

    print("KERNEL_OK")
</pallas_src>

<mosaic_0001>
module attributes {stable_mosaic.version = 11 : i64} {
  func.func @kernel(%arg0: memref<2x1x60xf32, #tpu.memory_space<any>>, %arg1: memref<2x4x16x16xf32, #tpu.memory_space<any>>, %arg2: memref<2x1x33xf32, #tpu.memory_space<any>>, %arg3: memref<2x1x100xf32, #tpu.memory_space<any>>, %arg4: memref<2x1x80xbf16, #tpu.memory_space<any>>, %arg5: memref<2x1x50xf32, #tpu.memory_space<any>>, %arg6: memref<6xf32, #tpu.memory_space<smem>>, %arg7: memref<2x1x60xf32, #tpu.memory_space<vmem>>, %arg8: memref<2x4x16x16xf32, #tpu.memory_space<vmem>>, %arg9: memref<2x1x33xf32, #tpu.memory_space<vmem>>, %arg10: memref<2x1x100xf32, #tpu.memory_space<vmem>>, %arg11: memref<2x1x80xbf16, #tpu.memory_space<vmem>>, %arg12: memref<2x1x50xf32, #tpu.memory_space<vmem>>, %arg13: memref<6x!tpu.dma_semaphore, #tpu.memory_space<semaphore_mem>>) attributes {dimension_semantics = [], scalar_prefetch = 0 : i64, scratch_operands = 7 : i64, tpu.core_type = #tpu.core_type<tc>} {
    %c0_i32 = arith.constant 0 : i32
    %0 = tpu.memref_slice %arg13[%c0_i32] : memref<6x!tpu.dma_semaphore, #tpu.memory_space<semaphore_mem>> -> memref<1x!tpu.dma_semaphore, #tpu.memory_space<semaphore_mem>>
    %1 = tpu.memref_squeeze %0 : memref<1x!tpu.dma_semaphore, #tpu.memory_space<semaphore_mem>> -> memref<!tpu.dma_semaphore, #tpu.memory_space<semaphore_mem>>
    tpu.enqueue_dma source(%arg0 : memref<2x1x60xf32, #tpu.memory_space<any>>) target(%arg7 : memref<2x1x60xf32, #tpu.memory_space<vmem>>) target_semaphore(%1 : memref<!tpu.dma_semaphore, #tpu.memory_space<semaphore_mem>>)
    %c1_i32 = arith.constant 1 : i32
    %2 = tpu.memref_slice %arg13[%c1_i32] : memref<6x!tpu.dma_semaphore, #tpu.memory_space<semaphore_mem>> -> memref<1x!tpu.dma_semaphore, #tpu.memory_space<semaphore_mem>>
    %3 = tpu.memref_squeeze %2 : memref<1x!tpu.dma_semaphore, #tpu.memory_space<semaphore_mem>> -> memref<!tpu.dma_semaphore, #tpu.memory_space<semaphore_mem>>
    tpu.enqueue_dma source(%arg1 : memref<2x4x16x16xf32, #tpu.memory_space<any>>) target(%arg8 : memref<2x4x16x16xf32, #tpu.memory_space<vmem>>) target_semaphore(%3 : memref<!tpu.dma_semaphore, #tpu.memory_space<semaphore_mem>>)
    %c2_i32 = arith.constant 2 : i32
    %4 = tpu.memref_slice %arg13[%c2_i32] : memref<6x!tpu.dma_semaphore, #tpu.memory_space<semaphore_mem>> -> memref<1x!tpu.dma_semaphore, #tpu.memory_space<semaphore_mem>>
    %5 = tpu.memref_squeeze %4 : memref<1x!tpu.dma_semaphore, #tpu.memory_space<semaphore_mem>> -> memref<!tpu.dma_semaphore, #tpu.memory_space<semaphore_mem>>
    tpu.enqueue_dma source(%arg2 : memref<2x1x33xf32, #tpu.memory_space<any>>) target(%arg9 : memref<2x1x33xf32, #tpu.memory_space<vmem>>) target_semaphore(%5 : memref<!tpu.dma_semaphore, #tpu.memory_space<semaphore_mem>>)
    %c3_i32 = arith.constant 3 : i32
    %6 = tpu.memref_slice %arg13[%c3_i32] : memref<6x!tpu.dma_semaphore, #tpu.memory_space<semaphore_mem>> -> memref<1x!tpu.dma_semaphore, #tpu.memory_space<semaphore_mem>>
    %7 = tpu.memref_squeeze %6 : memref<1x!tpu.dma_semaphore, #tpu.memory_space<semaphore_mem>> -> memref<!tpu.dma_semaphore, #tpu.memory_space<semaphore_mem>>
    tpu.enqueue_dma source(%arg3 : memref<2x1x100xf32, #tpu.memory_space<any>>) target(%arg10 : memref<2x1x100xf32, #tpu.memory_space<vmem>>) target_semaphore(%7 : memref<!tpu.dma_semaphore, #tpu.memory_space<semaphore_mem>>)
    %c0_i32_0 = arith.constant 0 : i32
    %8 = tpu.memref_slice %arg13[%c0_i32_0] : memref<6x!tpu.dma_semaphore, #tpu.memory_space<semaphore_mem>> -> memref<1x!tpu.dma_semaphore, #tpu.memory_space<semaphore_mem>>
    %9 = tpu.memref_squeeze %8 : memref<1x!tpu.dma_semaphore, #tpu.memory_space<semaphore_mem>> -> memref<!tpu.dma_semaphore, #tpu.memory_space<semaphore_mem>>
    tpu.wait_dma2 semaphore(%9 : memref<!tpu.dma_semaphore, #tpu.memory_space<semaphore_mem>>) src(%arg0 : memref<2x1x60xf32, #tpu.memory_space<any>>) dst(%arg7 : memref<2x1x60xf32, #tpu.memory_space<vmem>>)
    %c4_i32 = arith.constant 4 : i32
    %10 = tpu.memref_slice %arg13[%c4_i32] : memref<6x!tpu.dma_semaphore, #tpu.memory_space<semaphore_mem>> -> memref<1x!tpu.dma_semaphore, #tpu.memory_space<semaphore_mem>>
    %11 = tpu.memref_squeeze %10 : memref<1x!tpu.dma_semaphore, #tpu.memory_space<semaphore_mem>> -> memref<!tpu.dma_semaphore, #tpu.memory_space<semaphore_mem>>
    tpu.enqueue_dma source(%arg4 : memref<2x1x80xbf16, #tpu.memory_space<any>>) target(%arg11 : memref<2x1x80xbf16, #tpu.memory_space<vmem>>) target_semaphore(%11 : memref<!tpu.dma_semaphore, #tpu.memory_space<semaphore_mem>>)
    %c0 = arith.constant 0 : index
    %c0_1 = arith.constant 0 : index
    %c0_2 = arith.constant 0 : index
    %12 = vector.load %arg7[%c0, %c0_1, %c0_2] : memref<2x1x60xf32, #tpu.memory_space<vmem>>, vector<2x1x60xf32>
    %cst = arith.constant 1.000000e+00 : f32
    %13 = vector.broadcast %cst : f32 to vector<2x1x60xf32>
    %14 = arith.subf %12, %13 : vector<2x1x60xf32>
    %15 = arith.mulf %12, %14 : vector<2x1x60xf32>
    %16 = vector.shape_cast %15 : vector<2x1x60xf32> to vector<1x2x1x60xf32>
    %cst_3 = arith.constant dense<0.000000e+00> : vector<1xf32>
    %17 = vector.multi_reduction <add>, %16, %cst_3 [1, 2, 3] : vector<1x2x1x60xf32> to vector<1xf32>
    %18 = vector.shape_cast %17 : vector<1xf32> to vector<1x1x1x1xf32>
    %19 = vector.extract %18[0, 0, 0, 0] : f32 from vector<1x1x1x1xf32>
    %c0_4 = arith.constant 0 : index
    %20 = memref.load %arg6[%c0_4] : memref<6xf32, #tpu.memory_space<smem>>
    memref.store %19, %arg6[%c0_4] : memref<6xf32, #tpu.memory_space<smem>>
    %c1_i32_5 = arith.constant 1 : i32
    %21 = tpu.memref_slice %arg13[%c1_i32_5] : memref<6x!tpu.dma_semaphore, #tpu.memory_space<semaphore_mem>> -> memref<1x!tpu.dma_semaphore, #tpu.memory_space<semaphore_mem>>
    %22 = tpu.memref_squeeze %21 : memref<1x!tpu.dma_semaphore, #tpu.memory_space<semaphore_mem>> -> memref<!tpu.dma_semaphore, #tpu.memory_space<semaphore_mem>>
    tpu.wait_dma2 semaphore(%22 : memref<!tpu.dma_semaphore, #tpu.memory_space<semaphore_mem>>) src(%arg1 : memref<2x4x16x16xf32, #tpu.memory_space<any>>) dst(%arg8 : memref<2x4x16x16xf32, #tpu.memory_space<vmem>>)
    %c5_i32 = arith.constant 5 : i32
    %23 = tpu.memref_slice %arg13[%c5_i32] : memref<6x!tpu.dma_semaphore, #tpu.memory_space<semaphore_mem>> -> memref<1x!tpu.dma_semaphore, #tpu.memory_space<semaphore_mem>>
    %24 = tpu.memref_squeeze %23 : memref<1x!tpu.dma_semaphore, #tpu.memory_space<semaphore_mem>> -> memref<!tpu.dma_semaphore, #tpu.memory_space<semaphore_mem>>
    tpu.enqueue_dma source(%arg5 : memref<2x1x50xf32, #tpu.memory_space<any>>) target(%arg12 : memref<2x1x50xf32, #tpu.memory_space<vmem>>) target_semaphore(%24 : memref<!tpu.dma_semaphore, #tpu.memory_space<semaphore_mem>>)
    %c0_6 = arith.constant 0 : index
    %c0_7 = arith.constant 0 : index
    %c0_8 = arith.constant 0 : index
    %c0_9 = arith.constant 0 : index
    %25 = vector.load %arg8[%c0_6, %c0_7, %c0_8, %c0_9] : memref<2x4x16x16xf32, #tpu.memory_space<vmem>>, vector<2x4x16x16xf32>
    %cst_10 = arith.constant 1.000000e+00 : f32
    %26 = vector.broadcast %cst_10 : f32 to vector<2x4x16x16xf32>
    %27 = arith.subf %25, %26 : vector<2x4x16x16xf32>
    %28 = arith.mulf %25, %27 : vector<2x4x16x16xf32>
    %29 = vector.shape_cast %28 : vector<2x4x16x16xf32> to vector<1x2x4x16x16xf32>
    %cst_11 = arith.constant dense<0.000000e+00> : vector<1xf32>
    %30 = vector.multi_reduction <add>, %29, %cst_11 [1, 2, 3, 4] : vector<1x2x4x16x16xf32> to vector<1xf32>
    %31 = vector.shape_cast %30 : vector<1xf32> to vector<1x1x1x1x1xf32>
    %32 = vector.extract %31[0, 0, 0, 0, 0] : f32 from vector<1x1x1x1x1xf32>
    %c1 = arith.constant 1 : index
    %33 = memref.load %arg6[%c1] : memref<6xf32, #tpu.memory_space<smem>>
    memref.store %32, %arg6[%c1] : memref<6xf32, #tpu.memory_space<smem>>
    %c2_i32_12 = arith.constant 2 : i32
    %34 = tpu.memref_slice %arg13[%c2_i32_12] : memref<6x!tpu.dma_semaphore, #tpu.memory_space<semaphore_mem>> -> memref<1x!tpu.dma_semaphore, #tpu.memory_space<semaphore_mem>>
    %35 = tpu.memref_squeeze %34 : memref<1x!tpu.dma_semaphore, #tpu.memory_space<semaphore_mem>> -> memref<!tpu.dma_semaphore, #tpu.memory_space<semaphore_mem>>
    tpu.wait_dma2 semaphore(%35 : memref<!tpu.dma_semaphore, #tpu.memory_space<semaphore_mem>>) src(%arg2 : memref<2x1x33xf32, #tpu.memory_space<any>>) dst(%arg9 : memref<2x1x33xf32, #tpu.memory_space<vmem>>)
    %c0_13 = arith.constant 0 : index
    %c0_14 = arith.constant 0 : index
    %c0_15 = arith.constant 0 : index
    %36 = vector.load %arg9[%c0_13, %c0_14, %c0_15] : memref<2x1x33xf32, #tpu.memory_space<vmem>>, vector<2x1x33xf32>
    %cst_16 = arith.constant 1.000000e+00 : f32
    %37 = vector.broadcast %cst_16 : f32 to vector<2x1x33xf32>
    %38 = arith.subf %36, %37 : vector<2x1x33xf32>
    %39 = arith.mulf %36, %38 : vector<2x1x33xf32>
    %40 = vector.shape_cast %39 : vector<2x1x33xf32> to vector<1x2x1x33xf32>
    %cst_17 = arith.constant dense<0.000000e+00> : vector<1xf32>
    %41 = vector.multi_reduction <add>, %40, %cst_17 [1, 2, 3] : vector<1x2x1x33xf32> to vector<1xf32>
    %42 = vector.shape_cast %41 : vector<1xf32> to vector<1x1x1x1xf32>
    %43 = vector.extract %42[0, 0, 0, 0] : f32 from vector<1x1x1x1xf32>
    %c2 = arith.constant 2 : index
    %44 = memref.load %arg6[%c2] : memref<6xf32, #tpu.memory_space<smem>>
    memref.store %43, %arg6[%c2] : memref<6xf32, #tpu.memory_space<smem>>
    %c3_i32_18 = arith.constant 3 : i32
    %45 = tpu.memref_slice %arg13[%c3_i32_18] : memref<6x!tpu.dma_semaphore, #tpu.memory_space<semaphore_mem>> -> memref<1x!tpu.dma_semaphore, #tpu.memory_space<semaphore_mem>>
    %46 = tpu.memref_squeeze %45 : memref<1x!tpu.dma_semaphore, #tpu.memory_space<semaphore_mem>> -> memref<!tpu.dma_semaphore, #tpu.memory_space<semaphore_mem>>
    tpu.wait_dma2 semaphore(%46 : memref<!tpu.dma_semaphore, #tpu.memory_space<semaphore_mem>>) src(%arg3 : memref<2x1x100xf32, #tpu.memory_space<any>>) dst(%arg10 : memref<2x1x100xf32, #tpu.memory_space<vmem>>)
    %c0_19 = arith.constant 0 : index
    %c0_20 = arith.constant 0 : index
    %c0_21 = arith.constant 0 : index
    %47 = vector.load %arg10[%c0_19, %c0_20, %c0_21] : memref<2x1x100xf32, #tpu.memory_space<vmem>>, vector<2x1x100xf32>
    %cst_22 = arith.constant 1.000000e+00 : f32
    %48 = vector.broadcast %cst_22 : f32 to vector<2x1x100xf32>
    %49 = arith.subf %47, %48 : vector<2x1x100xf32>
    %50 = arith.mulf %47, %49 : vector<2x1x100xf32>
    %51 = vector.shape_cast %50 : vector<2x1x100xf32> to vector<1x2x1x100xf32>
    %cst_23 = arith.constant dense<0.000000e+00> : vector<1xf32>
    %52 = vector.multi_reduction <add>, %51, %cst_23 [1, 2, 3] : vector<1x2x1x100xf32> to vector<1xf32>
    %53 = vector.shape_cast %52 : vector<1xf32> to vector<1x1x1x1xf32>
    %54 = vector.extract %53[0, 0, 0, 0] : f32 from vector<1x1x1x1xf32>
    %c3 = arith.constant 3 : index
    %55 = memref.load %arg6[%c3] : memref<6xf32, #tpu.memory_space<smem>>
    memref.store %54, %arg6[%c3] : memref<6xf32, #tpu.memory_space<smem>>
    %c4_i32_24 = arith.constant 4 : i32
    %56 = tpu.memref_slice %arg13[%c4_i32_24] : memref<6x!tpu.dma_semaphore, #tpu.memory_space<semaphore_mem>> -> memref<1x!tpu.dma_semaphore, #tpu.memory_space<semaphore_mem>>
    %57 = tpu.memref_squeeze %56 : memref<1x!tpu.dma_semaphore, #tpu.memory_space<semaphore_mem>> -> memref<!tpu.dma_semaphore, #tpu.memory_space<semaphore_mem>>
    tpu.wait_dma2 semaphore(%57 : memref<!tpu.dma_semaphore, #tpu.memory_space<semaphore_mem>>) src(%arg4 : memref<2x1x80xbf16, #tpu.memory_space<any>>) dst(%arg11 : memref<2x1x80xbf16, #tpu.memory_space<vmem>>)
    %c0_25 = arith.constant 0 : index
    %c0_26 = arith.constant 0 : index
    %c0_27 = arith.constant 0 : index
    %58 = vector.load %arg11[%c0_25, %c0_26, %c0_27] : memref<2x1x80xbf16, #tpu.memory_space<vmem>>, vector<2x1x80xbf16>
    %59 = arith.extf %58 : vector<2x1x80xbf16> to vector<2x1x80xf32>
    %cst_28 = arith.constant 1.000000e+00 : f32
    %60 = vector.broadcast %cst_28 : f32 to vector<2x1x80xf32>
    %61 = arith.subf %59, %60 : vector<2x1x80xf32>
    %62 = arith.mulf %59, %61 : vector<2x1x80xf32>
    %63 = vector.shape_cast %62 : vector<2x1x80xf32> to vector<1x2x1x80xf32>
    %cst_29 = arith.constant dense<0.000000e+00> : vector<1xf32>
    %64 = vector.multi_reduction <add>, %63, %cst_29 [1, 2, 3] : vector<1x2x1x80xf32> to vector<1xf32>
    %65 = vector.shape_cast %64 : vector<1xf32> to vector<1x1x1x1xf32>
    %66 = vector.extract %65[0, 0, 0, 0] : f32 from vector<1x1x1x1xf32>
    %c4 = arith.constant 4 : index
    %67 = memref.load %arg6[%c4] : memref<6xf32, #tpu.memory_space<smem>>
    memref.store %66, %arg6[%c4] : memref<6xf32, #tpu.memory_space<smem>>
    %c5_i32_30 = arith.constant 5 : i32
    %68 = tpu.memref_slice %arg13[%c5_i32_30] : memref<6x!tpu.dma_semaphore, #tpu.memory_space<semaphore_mem>> -> memref<1x!tpu.dma_semaphore, #tpu.memory_space<semaphore_mem>>
    %69 = tpu.memref_squeeze %68 : memref<1x!tpu.dma_semaphore, #tpu.memory_space<semaphore_mem>> -> memref<!tpu.dma_semaphore, #tpu.memory_space<semaphore_mem>>
    tpu.wait_dma2 semaphore(%69 : memref<!tpu.dma_semaphore, #tpu.memory_space<semaphore_mem>>) src(%arg5 : memref<2x1x50xf32, #tpu.memory_space<any>>) dst(%arg12 : memref<2x1x50xf32, #tpu.memory_space<vmem>>)
    %c0_31 = arith.constant 0 : index
    %c0_32 = arith.constant 0 : index
    %c0_33 = arith.constant 0 : index
    %70 = vector.load %arg12[%c0_31, %c0_32, %c0_33] : memref<2x1x50xf32, #tpu.memory_space<vmem>>, vector<2x1x50xf32>
    %cst_34 = arith.constant 1.000000e+00 : f32
    %71 = vector.broadcast %cst_34 : f32 to vector<2x1x50xf32>
    %72 = arith.subf %70, %71 : vector<2x1x50xf32>
    %73 = arith.mulf %70, %72 : vector<2x1x50xf32>
    %74 = vector.shape_cast %73 : vector<2x1x50xf32> to vector<1x2x1x50xf32>
    %cst_35 = arith.constant dense<0.000000e+00> : vector<1xf32>
    %75 = vector.multi_reduction <add>, %74, %cst_35 [1, 2, 3] : vector<1x2x1x50xf32> to vector<1xf32>
    %76 = vector.shape_cast %75 : vector<1xf32> to vector<1x1x1x1xf32>
    %77 = vector.extract %76[0, 0, 0, 0] : f32 from vector<1x1x1x1xf32>
    %c5 = arith.constant 5 : index
    %78 = memref.load %arg6[%c5] : memref<6xf32, #tpu.memory_space<smem>>
    memref.store %77, %arg6[%c5] : memref<6xf32, #tpu.memory_space<smem>>
    return
  }
}

</mosaic_0001>

<llo_original>
// kernel: tpu_custom_call.1
$region0: #{tpu_custom_call.1}
  #allocation0 [shape = 'u32[]', space=smem, size = 0x4, offset = 0x4, fixed_abs, tag = 'smem constant byte address 0x4 - core index']
  #allocation1 [shape = 'u32[72,128]{1,0:T(1,128)}', space=vmem, size = 0x9000, scoped, tag = 'internal scratch']
  #allocation2 [shape = 'f32[2,1,60]{2,1,0:T(1,128)}', space=vmem, size = 0x400, scoped, tag = 'scratch operand']
  #allocation3 [shape = 'f32[2,4,16,16]{3,2,1,0:T(8,128)}', space=vmem, size = 0x10000, scoped, tag = 'scratch operand']
  #allocation4 [shape = 'f32[2,1,33]{2,1,0:T(1,128)}', space=vmem, size = 0x400, scoped, tag = 'scratch operand']
  #allocation5 [shape = 'f32[2,1,100]{2,1,0:T(1,128)}', space=vmem, size = 0x400, scoped, tag = 'scratch operand']
  #allocation6 [shape = 'bf16[2,1,80]{2,1,0:T(2,128)(2,1)}', space=vmem, size = 0x400, scoped, tag = 'scratch operand']
  #allocation7 [shape = 'f32[2,1,50]{2,1,0:T(1,128)}', space=vmem, size = 0x400, scoped, tag = 'scratch operand']
  #allocation8 [shape = 's32[6]{0}', space=sflag, size = 0x18, scoped, tag = 'scratch operand']
  #allocation11 [shape = 's32[]', space=sflag, size = 0x4, offset = 0, fixed_abs, tag = 'sflag constant byte address 0x0 - dummy sync flag']
  #allocation12 [shape = 's32[]', space=sflag, size = 0x4, offset = 0, fixed_abs, tag = 'sflag constant byte address 0x0 - dummy sync flag']
  #allocation13 [shape = 's32[]', space=sflag, size = 0x4, offset = 0, fixed_abs, tag = 'sflag constant byte address 0x0 - dummy sync flag']
  #allocation14 [shape = 'u32[]', space=smem, size = 0x4, offset = 0x44, fixed_abs, tag = 'smem constant byte address 0x44 - assertion arg 0']
  #allocation15 [shape = 'u32[]', space=smem, size = 0x4, offset = 0x48, fixed_abs, tag = 'smem constant byte address 0x48 - assertion arg 1']
  #allocation16 [shape = 's32[]', space=sflag, size = 0x4, offset = 0, fixed_abs, tag = 'sflag constant byte address 0x0 - dummy sync flag']
  #allocation17 [shape = 's32[]', space=sflag, size = 0x4, offset = 0, fixed_abs, tag = 'sflag constant byte address 0x0 - dummy sync flag']
  #allocation18 [shape = 's32[]', space=sflag, size = 0x4, offset = 0, fixed_abs, tag = 'sflag constant byte address 0x0 - dummy sync flag']
  #allocation19 [shape = 's32[]', space=sflag, size = 0x4, offset = 0, fixed_abs, tag = 'sflag constant byte address 0x0 - dummy sync flag']
  #allocation20 [shape = 's32[]', space=sflag, size = 0x4, offset = 0, fixed_abs, tag = 'sflag constant byte address 0x0 - dummy sync flag']
  #allocation21 [shape = 's32[]', space=sflag, size = 0x4, offset = 0, fixed_abs, tag = 'sflag constant byte address 0x0 - dummy sync flag']
  %s0 = inlined_call_operand.vmem [shape: f32[2,1,60], index: 0, kind: input, shape index: {}]
  %s1 = inlined_call_operand.hbm [shape: f32[2,4,16,16], index: 1, kind: input, shape index: {}]
  %s2 = inlined_call_operand.hbm [shape: f32[2,1,33], index: 2, kind: input, shape index: {}]
  %s3 = inlined_call_operand.hbm [shape: f32[2,1,100], index: 3, kind: input, shape index: {}]
  %s4 = inlined_call_operand.vmem [shape: bf16[2,1,80], index: 4, kind: input, shape index: {}]
  %s5 = inlined_call_operand.vmem [shape: f32[2,1,50], index: 5, kind: input, shape index: {}]
  %s6 = inlined_call_operand.hbm [shape: f32[6], index: 6, kind: output, shape index: {}]
  %s7 = sld [smem:[#allocation0]]
  $region112: #{tpu_custom_call.1} parent=0
    _
  %s9 = ssub.s32 1, %s7
  %s10 = scalar_select 0, %s9, %s7
  $region1: #{tpu_custom_call.1} parent=0
    #allocation9 [shape = 'u8[512]{0}', space=smem, size = 0x200, scoped, tag = 'output window, operand 0, single buffered']
    #allocation10 [shape = 's32[1]{0}', space=sflag, size = 0x4, scoped, tag = 'scoped memory for tpu_custom_call.1']
    %11 = vsyncpa [#allocation10], 0
    // Predicated region
    $region2: #{tpu_custom_call.1} parent=1 // pred_check
      _
    $region3: #{tpu_custom_call.1} parent=1 // pred_check_branch
      %13 = sbr.rel target = $region5
    $region4: #{tpu_custom_call.1} parent=1 // pred_region
      // Predicated region
      $region17: #{tpu_custom_call.1} parent=4 // pred_check
        _
      $region18: #{tpu_custom_call.1} parent=4 // pred_check_branch
        %29 = sbr.rel (0) target = $region20
      $region19: #{tpu_custom_call.1} parent=4 // pred_region
        %s31 = ssub.s32 4, 1
        loop: start=0, step=1, limit=1
        $region21: #{tpu_custom_call.1} parent=19 // loop_pre_header
          _
        $region22: #{tpu_custom_call.1} parent=19 // loop_header
          %s33 = sphi 0, %s37
          %p34 = scmp.ge.s32.totalorder %s33, 1
          %s38 = sphi %s0, %s0
          %s39 = sphi [#allocation2], [#allocation2]
        $region23: #{tpu_custom_call.1} parent=19 // loop_header_branch
          %36 = sbr.rel (%p34) target = $region27
        $region24: #{tpu_custom_call.1} parent=19 // loop_body
          %v40 = vld [vmem:[%s38] sm:%s31]
          %41 = vst [vmem:[%s39] sm:%s31] %v40
        $region25: #{tpu_custom_call.1} parent=19 // loop_footer
          %s37 = sadd.s32 1, %s33
        $region26: #{tpu_custom_call.1} parent=19 // loop_footer_branch
          %32 = sbr.rel target = $region22
        $region27: #{tpu_custom_call.1} parent=19 // loop_exit
          _
      $region20: #{tpu_custom_call.1} parent=4 // pred_fallthru
        _
    $region5: #{tpu_custom_call.1} parent=1 // pred_fallthru
      _
    // Predicated region
    $region6: #{tpu_custom_call.1} parent=1 // pred_check
      _
    $region7: #{tpu_custom_call.1} parent=1 // pred_check_branch
      %15 = sbr.rel (0) target = $region9
    $region8: #{tpu_custom_call.1} parent=1 // pred_region
      %s17 = ssub.s32 4, 1
      loop: start=0, step=1, limit=1
      $region10: #{tpu_custom_call.1} parent=8 // loop_pre_header
        _
      $region11: #{tpu_custom_call.1} parent=8 // loop_header
        %s19 = sphi 0, %s23
        %p20 = scmp.ge.s32.totalorder %s19, 1
        %s24 = sphi %s0, %s0
        %s25 = sphi [#allocation2], [#allocation2]
      $region12: #{tpu_custom_call.1} parent=8 // loop_header_branch
        %22 = sbr.rel (%p20) target = $region16
      $region13: #{tpu_custom_call.1} parent=8 // loop_body
        %v26 = vld [vmem:[%s24] sm:%s17]
        %27 = vst [vmem:[%s25] sm:%s17] %v26
      $region14: #{tpu_custom_call.1} parent=8 // loop_footer
        %s23 = sadd.s32 1, %s19
      $region15: #{tpu_custom_call.1} parent=8 // loop_footer_branch
        %18 = sbr.rel target = $region11
      $region16: #{tpu_custom_call.1} parent=8 // loop_exit
        _
    $region9: #{tpu_custom_call.1} parent=1 // pred_fallthru
      _
    // Predicated region
    $region28: #{tpu_custom_call.1} parent=1 // pred_check
      _
    $region29: #{tpu_custom_call.1} parent=1 // pred_check_branch
      %44 = sbr.rel (0) target = $region31
    $region30: #{tpu_custom_call.1} parent=1 // pred_region
      %45 = vsyncadd [#allocation8], 32
    $region31: #{tpu_custom_call.1} parent=1 // pred_fallthru
      _
    %s46 = scalar_lea.sflag [#allocation8], 1
    // Predicated region
    $region32: #{tpu_custom_call.1} parent=1 // pred_check
      _
    $region33: #{tpu_custom_call.1} parent=1 // pred_check_branch
      %48 = sbr.rel target = $region35
    $region34: #{tpu_custom_call.1} parent=1 // pred_region
      %49 = sst [smem:[#allocation14]] [#allocation13]
      %50 = sst [smem:[#allocation15]] [#allocation12]
    $region35: #{tpu_custom_call.1} parent=1 // pred_fallthru
      _
    %52 = shalt.err (0)
    %s54 = sshll.u32 %s1, 4
    %s55 = int_to_ptr.hbm [resolvable:$true] %s54
    %s56 = sshll.u32 [#allocation3], 4
    %s57 = int_to_ptr.vmem [resolvable:$true] %s56
    %59 = dma.hbm_to_vmem [thread:$0]  %s55, 2048, %s57, %s46
    %s60 = scalar_lea.sflag [#allocation8], 2
    // Predicated region
    $region36: #{tpu_custom_call.1} parent=1 // pred_check
      _
    $region37: #{tpu_custom_call.1} parent=1 // pred_check_branch
      %62 = sbr.rel target = $region39
    $region38: #{tpu_custom_call.1} parent=1 // pred_region
      %63 = sst [smem:[#allocation14]] [#allocation17]
      %64 = sst [smem:[#allocation15]] [#allocation16]
    $region39: #{tpu_custom_call.1} parent=1 // pred_fallthru
      _
    %66 = shalt.err (0)
    %s68 = sshll.u32 %s2, 4
    %s69 = int_to_ptr.hbm [resolvable:$true] %s68
    %s70 = sshll.u32 [#allocation4], 4
    %s71 = int_to_ptr.vmem [resolvable:$true] %s70
    %73 = dma.hbm_to_vmem [thread:$0]  %s69, 32, %s71, %s60
    %s74 = scalar_lea.sflag [#allocation8], 3
    // Predicated region
    $region40: #{tpu_custom_call.1} parent=1 // pred_check
      _
    $region41: #{tpu_custom_call.1} parent=1 // pred_check_branch
      %76 = sbr.rel target = $region43
    $region42: #{tpu_custom_call.1} parent=1 // pred_region
      %77 = sst [smem:[#allocation14]] [#allocation19]
      %78 = sst [smem:[#allocation15]] [#allocation18]
    $region43: #{tpu_custom_call.1} parent=1 // pred_fallthru
      _
    %80 = shalt.err (0)
    %s82 = sshll.u32 %s3, 4
    %s83 = int_to_ptr.hbm [resolvable:$true] %s82
    %s84 = sshll.u32 [#allocation5], 4
    %s85 = int_to_ptr.vmem [resolvable:$true] %s84
    %87 = dma.hbm_to_vmem [thread:$0]  %s83, 32, %s85, %s74
    %s88 = smul.u32 2, 1
    %s89 = smul.u32 %s88, 1
    %s90 = sshll.u32 %s89, 4
    %91 = dma.done [#allocation8], %s90
    %s92 = scalar_lea.sflag [#allocation8], 4
    // Predicated region
    $region44: #{tpu_custom_call.1} parent=1 // pred_check
      _
    $region45: #{tpu_custom_call.1} parent=1 // pred_check_branch
      %94 = sbr.rel target = $region47
    $region46: #{tpu_custom_call.1} parent=1 // pred_region
      // Predicated region
      $region59: #{tpu_custom_call.1} parent=46 // pred_check
        _
      $region60: #{tpu_custom_call.1} parent=46 // pred_check_branch
        %110 = sbr.rel (0) target = $region62
      $region61: #{tpu_custom_call.1} parent=46 // pred_region
        %s112 = ssub.s32 4, 1
        loop: start=0, step=1, limit=1
        $region63: #{tpu_custom_call.1} parent=61 // loop_pre_header
          _
        $region64: #{tpu_custom_call.1} parent=61 // loop_header
          %s114 = sphi 0, %s118
          %p115 = scmp.ge.s32.totalorder %s114, 1
          %s119 = sphi %s4, %s4
          %s120 = sphi [#allocation6], [#allocation6]
        $region65: #{tpu_custom_call.1} parent=61 // loop_header_branch
          %117 = sbr.rel (%p115) target = $region69
        $region66: #{tpu_custom_call.1} parent=61 // loop_body
          %v121 = vld [vmem:[%s119] sm:%s112]
          %122 = vst [vmem:[%s120] sm:%s112] %v121
        $region67: #{tpu_custom_call.1} parent=61 // loop_footer
          %s118 = sadd.s32 1, %s114
        $region68: #{tpu_custom_call.1} parent=61 // loop_footer_branch
          %113 = sbr.rel target = $region64
        $region69: #{tpu_custom_call.1} parent=61 // loop_exit
          _
      $region62: #{tpu_custom_call.1} parent=46 // pred_fallthru
        _
    $region47: #{tpu_custom_call.1} parent=1 // pred_fallthru
      _
    // Predicated region
    $region48: #{tpu_custom_call.1} parent=1 // pred_check
      _
    $region49: #{tpu_custom_call.1} parent=1 // pred_check_branch
      %96 = sbr.rel (0) target = $region51
    $region50: #{tpu_custom_call.1} parent=1 // pred_region
      %s98 = ssub.s32 4, 1
      loop: start=0, step=1, limit=1
      $region52: #{tpu_custom_call.1} parent=50 // loop_pre_header
        _
      $region53: #{tpu_custom_call.1} parent=50 // loop_header
        %s100 = sphi 0, %s104
        %p101 = scmp.ge.s32.totalorder %s100, 1
        %s105 = sphi %s4, %s4
        %s106 = sphi [#allocation6], [#allocation6]
      $region54: #{tpu_custom_call.1} parent=50 // loop_header_branch
        %103 = sbr.rel (%p101) target = $region58
      $region55: #{tpu_custom_call.1} parent=50 // loop_body
        %v107 = vld [vmem:[%s105] sm:%s98]
        %108 = vst [vmem:[%s106] sm:%s98] %v107
      $region56: #{tpu_custom_call.1} parent=50 // loop_footer
        %s104 = sadd.s32 1, %s100
      $region57: #{tpu_custom_call.1} parent=50 // loop_footer_branch
        %99 = sbr.rel target = $region53
      $region58: #{tpu_custom_call.1} parent=50 // loop_exit
        _
    $region51: #{tpu_custom_call.1} parent=1 // pred_fallthru
      _
    // Predicated region
    $region70: #{tpu_custom_call.1} parent=1 // pred_check
      _
    $region71: #{tpu_custom_call.1} parent=1 // pred_check_branch
      %125 = sbr.rel (0) target = $region73
    $region72: #{tpu_custom_call.1} parent=1 // pred_region
      %126 = vsyncadd %s92, 32
    $region73: #{tpu_custom_call.1} parent=1 // pred_fallthru
      _
    %v127 = vld [vmem:[#allocation2] sm:$0x1]
    %v128 = vld [vmem:[#allocation2 + $0x1] sm:$0x1]
    %v129 = vsub.f32 %v127, 1.0
    %v130 = vsub.f32 %v128, 1.0
    %v131 = vmul.f32 %v127, %v129
    %v132 = vmul.f32 %v128, %v130
    %vm133 = vcmask 483328
    %v134 = vsel %vm133, %v131, 0.0
    %v135 = vsel %vm133, %v132, 0.0
    %v136 = vadd.f32 %v134, %v135
    %137 = vadd.xlane.f32.xlu0 %v136
    %v138 = vpop.xlane.xlu0 %137
    %v139 = vrot.slane %v138, 4
    %v140 = vadd.f32 %v138, %v139
    %v141 = vrot.slane %v140, 2
    %v142 = vadd.f32 %v140, %v141
    %v143 = vrot.slane %v142, 1
    %v144 = vadd.f32 %v142, %v143
    %s145 = vtos %v144
    %s146 = scalar_lea.smem [#allocation9], 0
    %147 = sst [smem:[%s146]] %s145
    %s148 = smul.u32 2, 4
    %s149 = smul.u32 %s148, 16
    %s150 = smul.u32 %s149, 1
    %s151 = sshll.u32 %s150, 4
    %152 = dma.done %s46, %s151
    %s153 = scalar_lea.sflag [#allocation8], 5
    // Predicated region
    $region74: #{tpu_custom_call.1} parent=1 // pred_check
      _
    $region75: #{tpu_custom_call.1} parent=1 // pred_check_branch
      %155 = sbr.rel target = $region77
    $region76: #{tpu_custom_call.1} parent=1 // pred_region
      // Predicated region
      $region89: #{tpu_custom_call.1} parent=76 // pred_check
        _
      $region90: #{tpu_custom_call.1} parent=76 // pred_check_branch
        %171 = sbr.rel (0) target = $region92
      $region91: #{tpu_custom_call.1} parent=76 // pred_region
        %s173 = ssub.s32 4, 1
        loop: start=0, step=1, limit=1
        $region93: #{tpu_custom_call.1} parent=91 // loop_pre_header
          _
        $region94: #{tpu_custom_call.1} parent=91 // loop_header
          %s175 = sphi 0, %s179
          %p176 = scmp.ge.s32.totalorder %s175, 1
          %s180 = sphi %s5, %s5
          %s181 = sphi [#allocation7], [#allocation7]
        $region95: #{tpu_custom_call.1} parent=91 // loop_header_branch
          %178 = sbr.rel (%p176) target = $region99
        $region96: #{tpu_custom_call.1} parent=91 // loop_body
          %v182 = vld [vmem:[%s180] sm:%s173]
          %183 = vst [vmem:[%s181] sm:%s173] %v182
        $region97: #{tpu_custom_call.1} parent=91 // loop_footer
          %s179 = sadd.s32 1, %s175
        $region98: #{tpu_custom_call.1} parent=91 // loop_footer_branch
          %174 = sbr.rel target = $region94
        $region99: #{tpu_custom_call.1} parent=91 // loop_exit
          _
      $region92: #{tpu_custom_call.1} parent=76 // pred_fallthru
        _
    $region77: #{tpu_custom_call.1} parent=1 // pred_fallthru
      _
    // Predicated region
    $region78: #{tpu_custom_call.1} parent=1 // pred_check
      _
    $region79: #{tpu_custom_call.1} parent=1 // pred_check_branch
      %157 = sbr.rel (0) target = $region81
    $region80: #{tpu_custom_call.1} parent=1 // pred_region
      %s159 = ssub.s32 4, 1
      loop: start=0, step=1, limit=1
      $region82: #{tpu_custom_call.1} parent=80 // loop_pre_header
        _
      $region83: #{tpu_custom_call.1} parent=80 // loop_header
        %s161 = sphi 0, %s165
        %p162 = scmp.ge.s32.totalorder %s161, 1
        %s166 = sphi %s5, %s5
        %s167 = sphi [#allocation7], [#allocation7]
      $region84: #{tpu_custom_call.1} parent=80 // loop_header_branch
        %164 = sbr.rel (%p162) target = $region88
      $region85: #{tpu_custom_call.1} parent=80 // loop_body
        %v168 = vld [vmem:[%s166] sm:%s159]
        %169 = vst [vmem:[%s167] sm:%s159] %v168
      $region86: #{tpu_custom_call.1} parent=80 // loop_footer
        %s165 = sadd.s32 1, %s161
      $region87: #{tpu_custom_call.1} parent=80 // loop_footer_branch
        %160 = sbr.rel target = $region83
      $region88: #{tpu_custom_call.1} parent=80 // loop_exit
        _
    $region81: #{tpu_custom_call.1} parent=1 // pred_fallthru
      _
    // Predicated region
    $region100: #{tpu_custom_call.1} parent=1 // pred_check
      _
    $region101: #{tpu_custom_call.1} parent=1 // pred_check_branch
      %186 = sbr.rel (0) target = $region103
    $region102: #{tpu_custom_call.1} parent=1 // pred_region
      %187 = vsyncadd %s153, 32
    $region103: #{tpu_custom_call.1} parent=1 // pred_fallthru
      _
    %v188 = vld [vmem:[#allocation3] sm:$0xff]
    %v189 = vld [vmem:[#allocation3 + $0x8] sm:$0xff]
    %v190 = vld [vmem:[#allocation3 + $0x10] sm:$0xff]
    %v191 = vld [vmem:[#allocation3 + $0x18] sm:$0xff]
    %v192 = vld [vmem:[#allocation3 + $0x20] sm:$0xff]
    %v193 = vld [vmem:[#allocation3 + $0x28] sm:$0xff]
    %v194 = vld [vmem:[#allocation3 + $0x30] sm:$0xff]
    %v195 = vld [vmem:[#allocation3 + $0x38] sm:$0xff]
    %v196 = vld [vmem:[#allocation3 + $0x40] sm:$0xff]
    %v197 = vld [vmem:[#allocation3 + $0x48] sm:$0xff]
    %v198 = vld [vmem:[#allocation3 + $0x50] sm:$0xff]
    %v199 = vld [vmem:[#allocation3 + $0x58] sm:$0xff]
    %v200 = vld [vmem:[#allocation3 + $0x60] sm:$0xff]
    %v201 = vld [vmem:[#allocation3 + $0x68] sm:$0xff]
    %v202 = vld [vmem:[#allocation3 + $0x70] sm:$0xff]
    %v203 = vld [vmem:[#allocation3 + $0x78] sm:$0xff]
    %v204 = vsub.f32 %v188, 1.0
    %v205 = vsub.f32 %v189, 1.0
    %v206 = vsub.f32 %v190, 1.0
    %v207 = vsub.f32 %v191, 1.0
    %v208 = vsub.f32 %v192, 1.0
    %v209 = vsub.f32 %v193, 1.0
    %v210 = vsub.f32 %v194, 1.0
    %v211 = vsub.f32 %v195, 1.0
    %v212 = vsub.f32 %v196, 1.0
    %v213 = vsub.f32 %v197, 1.0
    %v214 = vsub.f32 %v198, 1.0
    %v215 = vsub.f32 %v199, 1.0
    %v216 = vsub.f32 %v200, 1.0
    %v217 = vsub.f32 %v201, 1.0
    %v218 = vsub.f32 %v202, 1.0
    %v219 = vsub.f32 %v203, 1.0
    %v220 = vmul.f32 %v188, %v204
    %v221 = vmul.f32 %v189, %v205
    %v222 = vmul.f32 %v190, %v206
    %v223 = vmul.f32 %v191, %v207
    %v224 = vmul.f32 %v192, %v208
    %v225 = vmul.f32 %v193, %v209
    %v226 = vmul.f32 %v194, %v210
    %v227 = vmul.f32 %v195, %v211
    %v228 = vmul.f32 %v196, %v212
    %v229 = vmul.f32 %v197, %v213
    %v230 = vmul.f32 %v198, %v214
    %v231 = vmul.f32 %v199, %v215
    %v232 = vmul.f32 %v200, %v216
    %v233 = vmul.f32 %v201, %v217
    %v234 = vmul.f32 %v202, %v218
    %v235 = vmul.f32 %v203, %v219
    %vm236 = vcmask 130048
    %v237 = vsel %vm236, %v220, 0.0
    %v238 = vsel %vm236, %v221, 0.0
    %v239 = vadd.f32 %v237, %v238
    %v240 = vsel %vm236, %v222, 0.0
    %v241 = vadd.f32 %v239, %v240
    %v242 = vsel %vm236, %v223, 0.0
    %v243 = vadd.f32 %v241, %v242
    %v244 = vsel %vm236, %v224, 0.0
    %v245 = vadd.f32 %v243, %v244
    %v246 = vsel %vm236, %v225, 0.0
    %v247 = vadd.f32 %v245, %v246
    %v248 = vsel %vm236, %v226, 0.0
    %v249 = vadd.f32 %v247, %v248
    %v250 = vsel %vm236, %v227, 0.0
    %v251 = vadd.f32 %v249, %v250
    %v252 = vsel %vm236, %v228, 0.0
    %v253 = vadd.f32 %v251, %v252
    %v254 = vsel %vm236, %v229, 0.0
    %v255 = vadd.f32 %v253, %v254
    %v256 = vsel %vm236, %v230, 0.0
    %v257 = vadd.f32 %v255, %v256
    %v258 = vsel %vm236, %v231, 0.0
    %v259 = vadd.f32 %v257, %v258
    %v260 = vsel %vm236, %v232, 0.0
    %v261 = vadd.f32 %v259, %v260
    %v262 = vsel %vm236, %v233, 0.0
    %v263 = vadd.f32 %v261, %v262
    %v264 = vsel %vm236, %v234, 0.0
    %v265 = vadd.f32 %v263, %v264
    %v266 = vsel %vm236, %v235, 0.0
    %v267 = vadd.f32 %v265, %v266
    %268 = vadd.xlane.f32.xlu0 %v267
    %v269 = vpop.xlane.xlu0 %268
    %v270 = vrot.slane %v269, 4
    %v271 = vadd.f32 %v269, %v270
    %v272 = vrot.slane %v271, 2
    %v273 = vadd.f32 %v271, %v272
    %v274 = vrot.slane %v273, 1
    %v275 = vadd.f32 %v273, %v274
    %s276 = vtos %v275
    %s277 = scalar_lea.smem [#allocation9], 1
    %278 = sst [smem:[%s277]] %s276
    %s279 = sshll.u32 %s89, 4
    %280 = dma.done %s60, %s279
    %v281 = vld [vmem:[#allocation4] sm:$0x1]
    %v282 = vld [vmem:[#allocation4 + $0x1] sm:$0x1]
    %v283 = vsub.f32 %v281, 1.0
    %v284 = vsub.f32 %v282, 1.0
    %v285 = vmul.f32 %v281, %v283
    %v286 = vmul.f32 %v282, %v284
    %vm287 = vcmask 262144
    %v288 = vsel %vm287, %v285, 0.0
    %v289 = vsel %vm287, %v286, 0.0
    %v290 = vadd.f32 %v288, %v289
    %291 = vadd.xlane.f32.xlu0 %v290
    %v292 = vpop.xlane.xlu0 %291
    %v293 = vrot.slane %v292, 4
    %v294 = vadd.f32 %v292, %v293
    %v295 = vrot.slane %v294, 2
    %v296 = vadd.f32 %v294, %v295
    %v297 = vrot.slane %v296, 1
    %v298 = vadd.f32 %v296, %v297
    %s299 = vtos %v298
    %s300 = scalar_lea.smem [#allocation9], 2
    %301 = sst [smem:[%s300]] %s299
    %s302 = sshll.u32 %s89, 4
    %303 = dma.done %s74, %s302
    %v304 = vld [vmem:[#allocation5] sm:$0x1]
    %v305 = vld [vmem:[#allocation5 + $0x1] sm:$0x1]
    %v306 = vsub.f32 %v304, 1.0
    %v307 = vsub.f32 %v305, 1.0
    %v308 = vmul.f32 %v304, %v306
    %v309 = vmul.f32 %v305, %v307
    %vm310 = vcmask 811008
    %v311 = vsel %vm310, %v308, 0.0
    %v312 = vsel %vm310, %v309, 0.0
    %v313 = vadd.f32 %v311, %v312
    %314 = vadd.xlane.f32.xlu0 %v313
    %v315 = vpop.xlane.xlu0 %314
    %v316 = vrot.slane %v315, 4
    %v317 = vadd.f32 %v315, %v316
    %v318 = vrot.slane %v317, 2
    %v319 = vadd.f32 %v317, %v318
    %v320 = vrot.slane %v319, 1
    %v321 = vadd.f32 %v319, %v320
    %s322 = vtos %v321
    %s323 = scalar_lea.smem [#allocation9], 3
    %324 = sst [smem:[%s323]] %s322
    %s325 = sshll.u32 %s89, 4
    %326 = dma.done %s92, %s325
    %v327 = vld [vmem:[#allocation6] sm:$0x1]
    %v328 = vld [vmem:[#allocation6 + $0x1] sm:$0x1]
    %v329 = vunpack.c.l.bf16 %v327
    %v330 = vunpack.c.l.bf16 %v328
    %v331 = vsub.f32 %v329, 1.0
    %v332 = vsub.f32 %v330, 1.0
    %v333 = vmul.f32 %v329, %v331
    %v334 = vmul.f32 %v330, %v332
    %vm335 = vcmask 647168
    %v336 = vsel %vm335, %v333, 0.0
    %v337 = vsel %vm335, %v334, 0.0
    %v338 = vadd.f32 %v336, %v337
    %339 = vadd.xlane.f32.xlu0 %v338
    %v340 = vpop.xlane.xlu0 %339
    %v341 = vrot.slane %v340, 4
    %v342 = vadd.f32 %v340, %v341
    %v343 = vrot.slane %v342, 2
    %v344 = vadd.f32 %v342, %v343
    %v345 = vrot.slane %v344, 1
    %v346 = vadd.f32 %v344, %v345
    %s347 = vtos %v346
    %s348 = scalar_lea.smem [#allocation9], 4
    %349 = sst [smem:[%s348]] %s347
    %s350 = sshll.u32 %s89, 4
    %351 = dma.done %s153, %s350
    %v352 = vld [vmem:[#allocation7] sm:$0x1]
    %v353 = vld [vmem:[#allocation7 + $0x1] sm:$0x1]
    %v354 = vsub.f32 %v352, 1.0
    %v355 = vsub.f32 %v353, 1.0
    %v356 = vmul.f32 %v352, %v354
    %v357 = vmul.f32 %v353, %v355
    %vm358 = vcmask 401408
    %v359 = vsel %vm358, %v356, 0.0
    %v360 = vsel %vm358, %v357, 0.0
    %v361 = vadd.f32 %v359, %v360
    %362 = vadd.xlane.f32.xlu0 %v361
    %v363 = vpop.xlane.xlu0 %362
    %v364 = vrot.slane %v363, 4
    %v365 = vadd.f32 %v363, %v364
    %v366 = vrot.slane %v365, 2
    %v367 = vadd.f32 %v365, %v366
    %v368 = vrot.slane %v367, 1
    %v369 = vadd.f32 %v367, %v368
    %s370 = vtos %v369
    %s371 = scalar_lea.smem [#allocation9], 5
    %372 = sst [smem:[%s371]] %s370
    // Predicated region
    $region104: #{tpu_custom_call.1} parent=1 // pred_check
      _
    $region105: #{tpu_custom_call.1} parent=1 // pred_check_branch
      %374 = sbr.rel (0) target = $region107
    $region106: #{tpu_custom_call.1} parent=1 // pred_region
      %376 = vsyncadd [#allocation10], 0
      %s378 = sshll.u32 %s6, 4
      %s379 = int_to_ptr.hbm [resolvable:$true] %s378
      %381 = dma.smem_to_hbm [#allocation9], 16, %s379, [#allocation10]
    $region107: #{tpu_custom_call.1} parent=1 // pred_fallthru
      _
    // Predicated region
    $region108: #{tpu_custom_call.1} parent=1 // pred_check
      _
    $region109: #{tpu_custom_call.1} parent=1 // pred_check_branch
      %383 = sbr.rel (0) target = $region111
    $region110: #{tpu_custom_call.1} parent=1 // pred_region
      %385 = dma.done [#allocation10], 16
    $region111: #{tpu_custom_call.1} parent=1 // pred_fallthru
      _
    %386 = sfence
    %387 = vsyncpa [#allocation10], 1
  %388 = vsyncmov [#allocation8]
  %s389 = vpop.sfrf %388
  %p390 = scmp.eq.s32.totalorder %s389, 0
  %p391 = pneg %p390
  %393 = shalt.err (%p391)
  %s394 = scalar_lea.sflag [#allocation8], 1
  %395 = vsyncmov %s394
  %s396 = vpop.sfrf %395
  %p397 = scmp.eq.s32.totalorder %s396, 0
  %p398 = pneg %p397
  %400 = shalt.err (%p398)
  %s401 = scalar_lea.sflag [#allocation8], 2
  %402 = vsyncmov %s401
  %s403 = vpop.sfrf %402
  %p404 = scmp.eq.s32.totalorder %s403, 0
  %p405 = pneg %p404
  %407 = shalt.err (%p405)
  %s408 = scalar_lea.sflag [#allocation8], 3
  %409 = vsyncmov %s408
  %s410 = vpop.sfrf %409
  %p411 = scmp.eq.s32.totalorder %s410, 0
  %p412 = pneg %p411
  %414 = shalt.err (%p412)
  %s415 = scalar_lea.sflag [#allocation8], 4
  %416 = vsyncmov %s415
  %s417 = vpop.sfrf %416
  %p418 = scmp.eq.s32.totalorder %s417, 0
  %p419 = pneg %p418
  %421 = shalt.err (%p419)
  %s422 = scalar_lea.sflag [#allocation8], 5
  %423 = vsyncmov %s422
  %s424 = vpop.sfrf %423
  %p425 = scmp.eq.s32.totalorder %s424, 0
  %p426 = pneg %p425
  %428 = shalt.err (%p426)

</llo_original>
